<compile_context>
chip_gen: v7x
topology: tpu7x:2x2x1
jax: 0.10.0
libtpu: 0.0.40
codegen_flags: <defaults>
</compile_context>

<pallas_src>
import functools

import jax
import jax.numpy as jnp
from jax.experimental import pallas as pl
from jax.experimental.pallas import tpu as pltpu

_LANE = 128
_SUBLANE = 8


def _gaines_mul_kernel(a_ref, b_ref, o_ref, *, mode):
    a = a_ref[...]
    b = b_ref[...]
    if mode == "unipolar":
        # AND of {0,1} bits == product.
        r = a * b
    elif mode == "bipolar":
        # XNOR of {0,1} bits: 1 - (a ^ b) == 1 - a - b + 2ab.
        r = 1.0 - a - b + 2.0 * a * b
    else:
        raise ValueError("GainesMul mode is not implemented.")
    o_ref[...] = r.astype(o_ref.dtype)


def gaines_mul(input_0, input_1, mode="bipolar", stype=jnp.float32,
               block_rows=2048):
    """Elementwise Gaines stochastic multiply. Returns an array of dtype
    `stype` with the same shape as the inputs. Valid for bit-stream inputs
    with values in {0, 1} (matching the int8 truncation semantics of the
    PyTorch module for such inputs)."""
    if mode not in ("unipolar", "bipolar"):
        raise ValueError("GainesMul mode is not implemented.")
    assert input_0.shape == input_1.shape
    orig_shape = input_0.shape
    n = input_0.size

    # TODO(synk): the biggest structural win would be bit-packing 32 stream
    # bits per uint32 upstream (32x less HBM traffic); kept float-per-bit to
    # match the module's interface.

    flat_a = input_0.reshape(-1)
    flat_b = input_1.reshape(-1)

    # Minimal pad so the flat stream views as a (rows, 128) slab with rows a
    # multiple of 8 (needed for (8,128)-divisible blocks when tiling).
    tile = _SUBLANE * _LANE
    n_pad = pl.cdiv(n, tile) * tile
    if n_pad != n:
        flat_a = jnp.pad(flat_a, (0, n_pad - n))
        flat_b = jnp.pad(flat_b, (0, n_pad - n))
    rows = n_pad // _LANE
    a2 = flat_a.reshape(rows, _LANE)
    b2 = flat_b.reshape(rows, _LANE)

    # Clamp block to the data; small inputs become a single full-array block
    # (grid of 1, no per-step pipeline overhead, no extra padding).
    br = min(block_rows, rows)
    grid = (pl.cdiv(rows, br),)

    # Scoped-VMEM budget: ~3 arrays x 2 pipeline buffers per block + headroom,
    # capped so large block_rows sweeps stay safe on v7x (64 MiB physical).
    itemsize = max(jnp.dtype(input_0.dtype).itemsize, jnp.dtype(stype).itemsize)
    vmem_limit = int(min(48 << 20, max(16 << 20, 8 * br * _LANE * itemsize)))

    kernel = functools.partial(_gaines_mul_kernel, mode=mode)

    out2 = pl.pallas_call(
        kernel,
        out_shape=jax.ShapeDtypeStruct((rows, _LANE), stype),
        grid=grid,
        in_specs=[
            pl.BlockSpec((br, _LANE), lambda i: (i, 0)),
            pl.BlockSpec((br, _LANE), lambda i: (i, 0)),
        ],
        out_specs=pl.BlockSpec((br, _LANE), lambda i: (i, 0)),
        compiler_params=pltpu.CompilerParams(
            dimension_semantics=("parallel",),
            vmem_limit_bytes=vmem_limit,
        ),
    )(a2, b2)

    out_flat = out2.reshape(-1)
    if n_pad != n:
        out_flat = out_flat[:n]
    return out_flat.reshape(orig_shape)


def _reference(input_0, input_1, mode):
    a = input_0.astype(jnp.int32)
    b = input_1.astype(jnp.int32)
    r = (a & b) if mode == "unipolar" else 1 - (a ^ b)
    return r.astype(jnp.float32)


if __name__ == "__main__":
    key = jax.random.PRNGKey(0)
    k0, k1 = jax.random.split(key)
    # Stochastic bit-streams: 0/1 values stored as float32, NCHW-ish shape.
    shape = (2, 4, 16, 16)
    x0 = jax.random.bernoulli(k0, 0.5, shape).astype(jnp.float32)
    x1 = jax.random.bernoulli(k1, 0.5, shape).astype(jnp.float32)

    ok = True
    for mode in ("bipolar", "unipolar"):
        out = jax.block_until_ready(gaines_mul(x0, x1, mode=mode))
        ref = _reference(x0, x1, mode)
        if out.shape != shape or out.dtype != jnp.float32:
            ok = False
        if not bool(jnp.all(out == ref)):
            ok = False

    if ok:
        print("KERNEL_OK")
</pallas_src>

<mosaic_0001>
module attributes {stable_mosaic.version = 11 : i64} {
  func.func @_gaines_mul_kernel(%arg0: i32, %arg1: memref<16x128xf32, #tpu.memory_space<vmem>>, %arg2: memref<16x128xf32, #tpu.memory_space<vmem>>, %arg3: memref<16x128xf32, #tpu.memory_space<vmem>>) attributes {dimension_semantics = [#tpu.dimension_semantics<parallel>], iteration_bounds = array<i64: 1>, scalar_prefetch = 0 : i64, scratch_operands = 0 : i64, tpu.core_type = #tpu.core_type<tc>, window_params = [{transform_indices = @transform_0, window_bounds = array<i64: 16, 128>}, {transform_indices = @transform_1, window_bounds = array<i64: 16, 128>}, {transform_indices = @transform_2, window_bounds = array<i64: 16, 128>}]} {
    %c0 = arith.constant 0 : index
    %c0_0 = arith.constant 0 : index
    %0 = vector.load %arg1[%c0, %c0_0] : memref<16x128xf32, #tpu.memory_space<vmem>>, vector<16x128xf32>
    %c0_1 = arith.constant 0 : index
    %c0_2 = arith.constant 0 : index
    %1 = vector.load %arg2[%c0_1, %c0_2] : memref<16x128xf32, #tpu.memory_space<vmem>>, vector<16x128xf32>
    %cst = arith.constant 1.000000e+00 : f32
    %2 = vector.broadcast %cst : f32 to vector<16x128xf32>
    %3 = arith.subf %2, %0 : vector<16x128xf32>
    %4 = arith.subf %3, %1 : vector<16x128xf32>
    %cst_3 = arith.constant 2.000000e+00 : f32
    %5 = vector.broadcast %cst_3 : f32 to vector<16x128xf32>
    %6 = arith.mulf %5, %0 : vector<16x128xf32>
    %7 = arith.mulf %6, %1 : vector<16x128xf32>
    %8 = arith.addf %4, %7 : vector<16x128xf32>
    %c0_4 = arith.constant 0 : index
    %c0_5 = arith.constant 0 : index
    %9 = vector.load %arg3[%c0_4, %c0_5] : memref<16x128xf32, #tpu.memory_space<vmem>>, vector<16x128xf32>
    tpu.vector_store %arg3[%c0_4, %c0_5], %8 {strides = array<i32>} : memref<16x128xf32, #tpu.memory_space<vmem>>, vector<16x128xf32>,
    return
  }
  func.func @transform_0(%arg0: i32) -> (i32, i32) {
    %c0_i32 = arith.constant 0 : i32
    %c0_i32_0 = arith.constant 0 : i32
    return %arg0, %c0_i32 : i32, i32
  }
  func.func @transform_1(%arg0: i32) -> (i32, i32) {
    %c0_i32 = arith.constant 0 : i32
    %c0_i32_0 = arith.constant 0 : i32
    return %arg0, %c0_i32 : i32, i32
  }
  func.func @transform_2(%arg0: i32) -> (i32, i32) {
    %c0_i32 = arith.constant 0 : i32
    %c0_i32_0 = arith.constant 0 : i32
    return %arg0, %c0_i32 : i32, i32
  }
}

</mosaic_0001>

<llo_original>
// kernel: tpu_custom_call.1
$region0: #{tpu_custom_call.1}
  #allocation0 [shape = 'u32[]', space=smem, size = 0x4, offset = 0x4, fixed_abs, tag = 'smem constant byte address 0x4 - core index']
  #allocation1 [shape = 'u32[144,128]{1,0:T(1,128)}', space=vmem, size = 0x12000, scoped, tag = 'internal scratch']
  %s0 = inlined_call_operand.hbm [shape: f32[16,128], index: 0, kind: input, shape index: {}]
  %s1 = inlined_call_operand.hbm [shape: f32[16,128], index: 1, kind: input, shape index: {}]
  %s2 = inlined_call_operand.hbm [shape: f32[16,128], index: 2, kind: output, shape index: {}]
  %s3 = sld [smem:[#allocation0]]
  $region26: #{tpu_custom_call.1} parent=0
    _
  %s5 = ssub.s32 1, %s3
  %s6 = scalar_select 0, %s5, %s3
  $region1: #{tpu_custom_call.1} parent=0
    #allocation2 [shape = 'u8[8192]{0}', space=vmem, size = 0x2000, scoped, tag = 'input window, operand 0, single buffered']
    #allocation3 [shape = 's32[1]{0}', space=sflag, size = 0x4, scoped, tag = 'scoped memory for tpu_custom_call.1']
    #allocation4 [shape = 's32[1]{0}', space=sflag, size = 0x4, scoped, tag = 'scoped memory for tpu_custom_call.1']
    #allocation5 [shape = 'u8[8192]{0}', space=vmem, size = 0x2000, scoped, tag = 'input window, operand 1, single buffered']
    #allocation6 [shape = 's32[1]{0}', space=sflag, size = 0x4, scoped, tag = 'scoped memory for tpu_custom_call.1']
    #allocation7 [shape = 'u8[8192]{0}', space=vmem, size = 0x2000, scoped, tag = 'output window, operand 0, single buffered']
    %7 = vsyncpa [#allocation3], 0
    %8 = vsyncpa [#allocation6], 0
    %9 = vsyncpa [#allocation4], 0
    // Predicated region
    $region2: #{tpu_custom_call.1} parent=1 // pred_check
      _
    $region3: #{tpu_custom_call.1} parent=1 // pred_check_branch
      %11 = sbr.rel (0) target = $region5
    $region4: #{tpu_custom_call.1} parent=1 // pred_region
      %s13 = ssub.s32 256, 256
      %14 = vsyncadd [#allocation3], %s13
      %s15 = sshll.u32 [#allocation2], 4
      %s16 = int_to_ptr.vmem [resolvable:$true] %s15
      %21 = dma.hbm_to_vmem [thread:$0]  %s0, 256, %s16, [#allocation3], 128, 128, 8
    $region5: #{tpu_custom_call.1} parent=1 // pred_fallthru
      _
    // Predicated region
    $region6: #{tpu_custom_call.1} parent=1 // pred_check
      _
    $region7: #{tpu_custom_call.1} parent=1 // pred_check_branch
      %23 = sbr.rel (0) target = $region9
    $region8: #{tpu_custom_call.1} parent=1 // pred_region
      %s25 = ssub.s32 256, 256
      %26 = vsyncadd [#allocation6], %s25
      %s27 = sshll.u32 [#allocation5], 4
      %s28 = int_to_ptr.vmem [resolvable:$true] %s27
      %33 = dma.hbm_to_vmem [thread:$0]  %s1, 256, %s28, [#allocation6], 128, 128, 8
    $region9: #{tpu_custom_call.1} parent=1 // pred_fallthru
      _
    // Predicated region
    $region10: #{tpu_custom_call.1} parent=1 // pred_check
      _
    $region11: #{tpu_custom_call.1} parent=1 // pred_check_branch
      %35 = sbr.rel (0) target = $region13
    $region12: #{tpu_custom_call.1} parent=1 // pred_region
      %36 = dma.done [#allocation3], 256
    $region13: #{tpu_custom_call.1} parent=1 // pred_fallthru
      _
    // Predicated region
    $region14: #{tpu_custom_call.1} parent=1 // pred_check
      _
    $region15: #{tpu_custom_call.1} parent=1 // pred_check_branch
      %38 = sbr.rel (0) target = $region17
    $region16: #{tpu_custom_call.1} parent=1 // pred_region
      %39 = dma.done [#allocation6], 256
    $region17: #{tpu_custom_call.1} parent=1 // pred_fallthru
      _
    %v40 = vld [vmem:[#allocation2] sm:$0xff]
    %v41 = vld [vmem:[#allocation2 + $0x8] sm:$0xff]
    %v42 = vld [vmem:[#allocation5] sm:$0xff]
    %v43 = vld [vmem:[#allocation5 + $0x8] sm:$0xff]
    %v44 = vsub.f32 1.0, %v40
    %v45 = vsub.f32 1.0, %v41
    %v46 = vsub.f32 %v44, %v42
    %v47 = vsub.f32 %v45, %v43
    %v48 = vmul.f32 %v40, 2.0
    %v49 = vmul.f32 %v41, 2.0
    %v50 = vmul.f32 %v48, %v42
    %v51 = vmul.f32 %v49, %v43
    %v52 = vadd.f32 %v46, %v50
    %v53 = vadd.f32 %v47, %v51
    %54 = vst [vmem:[#allocation7] sm:$0xff] %v52
    %55 = vst [vmem:[#allocation7 + $0x8] sm:$0xff] %v53
    // Predicated region
    $region18: #{tpu_custom_call.1} parent=1 // pred_check
      _
    $region19: #{tpu_custom_call.1} parent=1 // pred_check_branch
      %57 = sbr.rel (0) target = $region21
    $region20: #{tpu_custom_call.1} parent=1 // pred_region
      %s59 = ssub.s32 256, 256
      %60 = vsyncadd [#allocation4], %s59
      %s61 = sshll.u32 [#allocation7], 4
      %s62 = int_to_ptr.vmem [resolvable:$true] %s61
      %67 = dma.vmem_to_hbm [thread:$0]  %s62, 256, %s2, [#allocation4], 128, 128, 8
    $region21: #{tpu_custom_call.1} parent=1 // pred_fallthru
      _
    // Predicated region
    $region22: #{tpu_custom_call.1} parent=1 // pred_check
      _
    $region23: #{tpu_custom_call.1} parent=1 // pred_check_branch
      %69 = sbr.rel (0) target = $region25
    $region24: #{tpu_custom_call.1} parent=1 // pred_region
      %70 = dma.done [#allocation4], 256
    $region25: #{tpu_custom_call.1} parent=1 // pred_fallthru
      _
    %71 = vsyncpa [#allocation3], 1
    %72 = vsyncpa [#allocation6], 1
    %73 = vsyncpa [#allocation4], 1

</llo_original>
